<compile_context>
chip_gen: v6e
topology: v6e:2x2x1
jax: 0.10.0
libtpu: 0.0.40
codegen_flags: <defaults>
</compile_context>

<pallas_src>
import jax
import jax.numpy as jnp
from jax.experimental import pallas as pl
from jax.experimental.pallas import tpu as pltpu


def addmm_kernel(bias_ref, mat1_ref, w_ref, o_ref):
    # One MXU matmul on the (TM, K) x (K, 128) tile + elementwise bias add.
    acc = jnp.dot(mat1_ref[...], w_ref[...], preferred_element_type=jnp.float32)
    o_ref[...] = (bias_ref[...].astype(jnp.float32) + acc).astype(o_ref.dtype)


def model_forward(x1, x2, conv_weight, *, tm=256):
    """x1: (M, N) bias, x2: (M, K) mat1, conv_weight: (K, N, 1, 1) -> mat2 (K, N)."""
    K, N = conv_weight.shape[0], conv_weight.shape[1]
    w2d = conv_weight.reshape(K, N)  # (8, 3)
    M = x2.shape[0]
    assert x2.shape[1] == K and x1.shape == (M, N)

    # Lane-dense slab: pad the tiny N dim up to a full 128-lane vreg width and
    # round M up to a whole number of TM-row tiles.  Padding is zeros, so the
    # extra columns/rows compute to zero and are sliced away below.
    N_PAD = 128
    n_tiles = pl.cdiv(M, tm)
    M_pad = n_tiles * tm

    w_p = jnp.zeros((K, N_PAD), w2d.dtype).at[:, :N].set(w2d)
    x1_p = jnp.zeros((M_pad, N_PAD), x1.dtype).at[:M, :N].set(x1)
    x2_p = jnp.zeros((M_pad, K), x2.dtype).at[:M, :].set(x2)

    out = pl.pallas_call(
        addmm_kernel,
        out_shape=jax.ShapeDtypeStruct((M_pad, N_PAD), x1.dtype),
        grid=(n_tiles,),
        in_specs=[
            pl.BlockSpec((tm, N_PAD), lambda i: (i, 0)),  # bias tile
            pl.BlockSpec((tm, K), lambda i: (i, 0)),      # mat1 tile (K=8 = full dim)
            pl.BlockSpec((K, N_PAD), lambda i: (0, 0)),   # weight: resident, DMA'd once
        ],
        out_specs=pl.BlockSpec((tm, N_PAD), lambda i: (i, 0)),
        compiler_params=pltpu.CompilerParams(
            dimension_semantics=("parallel",),
        ),
    )(x1_p, x2_p, w_p)

    v1 = out[:M, :N]
    # torch.cat([v1], dim=1) with a single tensor is the identity.
    v2 = v1
    return v2


if __name__ == "__main__":
    key = jax.random.PRNGKey(0)
    k_w, k_x1, k_x2 = jax.random.split(key, 3)

    # Conv2d(3, 8, kernel_size=1) weight: (out_channels=8, in_channels=3, 1, 1)
    out_ch, in_ch = 8, 3
    fan_in = in_ch * 1 * 1
    bound = 1.0 / jnp.sqrt(fan_in)
    conv_weight = jax.random.uniform(
        k_w, (out_ch, in_ch, 1, 1), minval=-bound, maxval=bound, dtype=jnp.float32
    )

    # Small-but-nontrivial M (exercises the 2-tile grid and the padding path):
    # mat1 (M, 8), mat2 (8, 3), bias (M, 3) -> out (M, 3)
    M = 300
    x1 = jax.random.normal(k_x1, (M, in_ch), dtype=jnp.float32)   # bias
    x2 = jax.random.normal(k_x2, (M, out_ch), dtype=jnp.float32)  # mat1

    out = model_forward(x1, x2, conv_weight)
    jax.block_until_ready(out)

    # Reference check in plain JAX
    ref = x1 + x2 @ conv_weight.reshape(out_ch, in_ch)
    assert out.shape == (M, in_ch)
    assert jnp.allclose(out, ref, atol=1e-5, rtol=1e-5), "mismatch vs reference"

    print("KERNEL_OK")
</pallas_src>

<mosaic_0001>
module attributes {stable_mosaic.version = 11 : i64} {
  func.func @addmm_kernel(%arg0: i32, %arg1: memref<256x128xf32, #tpu.memory_space<vmem>>, %arg2: memref<256x8xf32, #tpu.memory_space<vmem>>, %arg3: memref<8x128xf32, #tpu.memory_space<vmem>>, %arg4: memref<256x128xf32, #tpu.memory_space<vmem>>) attributes {dimension_semantics = [#tpu.dimension_semantics<parallel>], iteration_bounds = array<i64: 2>, scalar_prefetch = 0 : i64, scratch_operands = 0 : i64, tpu.core_type = #tpu.core_type<tc>, window_params = [{transform_indices = @transform_0, window_bounds = array<i64: 256, 128>}, {transform_indices = @transform_1, window_bounds = array<i64: 256, 8>}, {pipeline_mode = #tpu.pipeline_mode<synchronous>, transform_indices = @transform_2, window_bounds = array<i64: 8, 128>}, {transform_indices = @transform_3, window_bounds = array<i64: 256, 128>}]} {
    %c0 = arith.constant 0 : index
    %c0_0 = arith.constant 0 : index
    %0 = vector.load %arg2[%c0, %c0_0] : memref<256x8xf32, #tpu.memory_space<vmem>>, vector<256x8xf32>
    %c0_1 = arith.constant 0 : index
    %c0_2 = arith.constant 0 : index
    %1 = vector.load %arg3[%c0_1, %c0_2] : memref<8x128xf32, #tpu.memory_space<vmem>>, vector<8x128xf32>
    %cst = arith.constant dense<0.000000e+00> : vector<256x128xf32>
    %2 = tpu.matmul %0, %1, %cst {dimension_numbers = #tpu.dot_dimension_numbers<[1], [0], [0], [1], [0, 0, 1, 1], [], []>} : vector<256x8xf32>, vector<8x128xf32>, vector<256x128xf32> -> vector<256x128xf32>
    %c0_3 = arith.constant 0 : index
    %c0_4 = arith.constant 0 : index
    %3 = vector.load %arg1[%c0_3, %c0_4] : memref<256x128xf32, #tpu.memory_space<vmem>>, vector<256x128xf32>
    %4 = arith.addf %3, %2 : vector<256x128xf32>
    %c0_5 = arith.constant 0 : index
    %c0_6 = arith.constant 0 : index
    %5 = vector.load %arg4[%c0_5, %c0_6] : memref<256x128xf32, #tpu.memory_space<vmem>>, vector<256x128xf32>
    tpu.vector_store %arg4[%c0_5, %c0_6], %4 {strides = array<i32>} : memref<256x128xf32, #tpu.memory_space<vmem>>, vector<256x128xf32>,
    return
  }
  func.func @transform_0(%arg0: i32) -> (i32, i32) {
    %c0_i32 = arith.constant 0 : i32
    %c0_i32_0 = arith.constant 0 : i32
    return %arg0, %c0_i32 : i32, i32
  }
  func.func @transform_1(%arg0: i32) -> (i32, i32) {
    %c0_i32 = arith.constant 0 : i32
    %c0_i32_0 = arith.constant 0 : i32
    return %arg0, %c0_i32 : i32, i32
  }
  func.func @transform_2(%arg0: i32) -> (i32, i32) {
    %c0_i32 = arith.constant 0 : i32
    %c0_i32_0 = arith.constant 0 : i32
    %c0_i32_1 = arith.constant 0 : i32
    return %c0_i32, %c0_i32_0 : i32, i32
  }
  func.func @transform_3(%arg0: i32) -> (i32, i32) {
    %c0_i32 = arith.constant 0 : i32
    %c0_i32_0 = arith.constant 0 : i32
    return %arg0, %c0_i32 : i32, i32
  }
}

</mosaic_0001>

<llo_original>
// kernel: tpu_custom_call.1
$region0: #{tpu_custom_call.1}
  #allocation0 [shape = 'u32[]', space=smem, size = 0x4, offset = 0x4, fixed_abs, tag = 'smem constant byte address 0x4 - core index']
  #allocation1 [shape = 'u32[144,128]{1,0:T(1,128)}', space=vmem, size = 0x12000, scoped, tag = 'internal scratch']
  %s0 = inlined_call_operand.vmem [shape: f32[512,128], index: 0, kind: input, shape index: {}]
  %s1 = inlined_call_operand.vmem [shape: f32[512,8], index: 1, kind: input, shape index: {}]
  %s2 = inlined_call_operand.vmem [shape: f32[8,128], index: 2, kind: input, shape index: {}]
  %s3 = inlined_call_operand.hbm [shape: f32[512,128], index: 3, kind: output, shape index: {}]
  %s4 = sld [smem:[#allocation0]]
  $region45: #{tpu_custom_call.1} parent=0
    _
  %s6 = ssub.s32 1, %s4
  %s7 = scalar_select 0, %s6, %s4
  $region1: #{tpu_custom_call.1} parent=0
    #allocation2 [shape = 'u8[262144]{0}', space=vmem, size = 0x40000, scoped, tag = 'output window, operand 0']
    #allocation3 [shape = 's32[2]{0}', space=sflag, size = 0x8, scoped, tag = 'scoped memory for tpu_custom_call.1']
    %8 = vsyncpa [#allocation3], 0
    %s9 = scalar_lea.sflag [#allocation3], 1
    %10 = vsyncpa %s9, 0
    loop: start=0, step=1, limit=4
    $region2: #{tpu_custom_call.1} parent=1 // loop_pre_header
      _
    $region3: #{tpu_custom_call.1} parent=1 // loop_header
      %s12 = sphi 0, %s16
      %p13 = scmp.ge.s32.totalorder %s12, 4
      %s22 = sphi 0, %s24
      %s25 = sphi 0, %s22
      %s26 = sphi 0, %s25
      %s42 = sphi 0, %s26
      %s48 = sphi 0, %s50
      %s51 = sphi 0, %s48
      %s52 = sphi 0, %s51
      %s68 = sphi 0, %s52
      %s72 = sphi 0, %s72
      %s74 = sphi 0, %s72
      %s75 = sphi 0, %s74
      %s89 = sphi 0, %s75
      %s95 = sphi 0, %s97
      %s98 = sphi 0, %s95
      %s99 = sphi 0, %s98
      %s115 = sphi 0, %s99
    $region4: #{tpu_custom_call.1} parent=1 // loop_header_branch
      %15 = sbr.rel (%p13) target = $region8
    $region5: #{tpu_custom_call.1} parent=1 // loop_body
      %s17 = ssub.s32 %s12, 1
      %s18 = ssub.s32 %s12, 2
      %s19 = sadd.s32 %s12, 1
      %s20 = ssub.s32 %s12, %s19
      %p21 = scmp.eq.s32.totalorder %s20, 0
      %s23 = sadd.s32 %s22, 1
      %s24 = scalar_select %p21, %s22, %s23
      %p27 = pneg %p21
      %p28 = scmp.eq.s32.totalorder %s12, 1
      %p29 = por %p27, %p28
      %p30 = scmp.ne.s32.totalorder %s22, %s25
      %p31 = scmp.eq.s32.totalorder %s12, 0
      %p32 = por %p30, %p31
      %p33 = scmp.ne.s32.totalorder %s22, %s25
      %p34 = scmp.eq.s32.totalorder %s17, 1
      %p35 = por %p33, %p34
      %p36 = scmp.ne.s32.totalorder %s25, %s26
      %p37 = scmp.eq.s32.totalorder %s17, 0
      %p38 = por %p36, %p37
      %p39 = scmp.ne.s32.totalorder %s25, %s26
      %p40 = scmp.eq.s32.totalorder %s18, 1
      %p41 = por %p39, %p40
      %p43 = scmp.ne.s32.totalorder %s26, %s42
      %p44 = scmp.eq.s32.totalorder %s18, 0
      %p45 = por %p43, %p44
      %s46 = ssub.s32 %s12, %s19
      %p47 = scmp.eq.s32.totalorder %s46, 0
      %s49 = sadd.s32 %s48, 1
      %s50 = scalar_select %p47, %s48, %s49
      %p53 = pneg %p47
      %p54 = scmp.eq.s32.totalorder %s12, 1
      %p55 = por %p53, %p54
      %p56 = scmp.ne.s32.totalorder %s48, %s51
      %p57 = scmp.eq.s32.totalorder %s12, 0
      %p58 = por %p56, %p57
      %p59 = scmp.ne.s32.totalorder %s48, %s51
      %p60 = scmp.eq.s32.totalorder %s17, 1
      %p61 = por %p59, %p60
      %p62 = scmp.ne.s32.totalorder %s51, %s52
      %p63 = scmp.eq.s32.totalorder %s17, 0
      %p64 = por %p62, %p63
      %p65 = scmp.ne.s32.totalorder %s51, %s52
      %p66 = scmp.eq.s32.totalorder %s18, 1
      %p67 = por %p65, %p66
      %p69 = scmp.ne.s32.totalorder %s52, %s68
      %p70 = scmp.eq.s32.totalorder %s18, 0
      %p71 = por %p69, %p70
      %s73 = sadd.s32 %s72, 1
      %p76 = scmp.eq.s32.totalorder %s12, 1
      %p77 = scmp.ne.s32.totalorder %s72, %s74
      %p78 = scmp.eq.s32.totalorder %s12, 0
      %p79 = por %p77, %p78
      %p80 = scmp.ne.s32.totalorder %s72, %s74
      %p81 = scmp.eq.s32.totalorder %s17, 1
      %p82 = por %p80, %p81
      %p83 = scmp.ne.s32.totalorder %s74, %s75
      %p84 = scmp.eq.s32.totalorder %s17, 0
      %p85 = por %p83, %p84
      %p86 = scmp.ne.s32.totalorder %s74, %s75
      %p87 = scmp.eq.s32.totalorder %s18, 1
      %p88 = por %p86, %p87
      %p90 = scmp.ne.s32.totalorder %s75, %s89
      %p91 = scmp.eq.s32.totalorder %s18, 0
      %p92 = por %p90, %p91
      %s93 = ssub.s32 %s12, %s19
      %p94 = scmp.eq.s32.totalorder %s93, 0
      %s96 = sadd.s32 %s95, 1
      %s97 = scalar_select %p94, %s95, %s96
      %p100 = pneg %p94
      %p101 = scmp.eq.s32.totalorder %s12, 1
      %p102 = por %p100, %p101
      %p103 = scmp.ne.s32.totalorder %s95, %s98
      %p104 = scmp.eq.s32.totalorder %s12, 0
      %p105 = por %p103, %p104
      %p106 = scmp.ne.s32.totalorder %s95, %s98
      %p107 = scmp.eq.s32.totalorder %s17, 1
      %p108 = por %p106, %p107
      %p109 = scmp.ne.s32.totalorder %s98, %s99
      %p110 = scmp.eq.s32.totalorder %s17, 0
      %p111 = por %p109, %p110
      %p112 = scmp.ne.s32.totalorder %s98, %s99
      %p113 = scmp.eq.s32.totalorder %s18, 1
      %p114 = por %p112, %p113
      %p116 = scmp.ne.s32.totalorder %s99, %s115
      %p117 = scmp.eq.s32.totalorder %s18, 0
      %p118 = por %p116, %p117
      %p119 = scmp.le.s32.totalorder 1, %s12
      %p120 = scmp.lt.s32.totalorder %s12, 3
      %p121 = pnand %p119, %p120
      %p122 = pneg %p121
      // Predicated region
      $region9: #{tpu_custom_call.1} parent=5 // pred_check
        _
      $region10: #{tpu_custom_call.1} parent=5 // pred_check_branch
        %124 = sbr.rel (%p121) target = $region12
      $region11: #{tpu_custom_call.1} parent=5 // pred_region
        %s125 = ssub.s32 %s12, 1
        // Predicated region
        $region13: #{tpu_custom_call.1} parent=11 // pred_check
          %p126 = pneg %p85
        $region14: #{tpu_custom_call.1} parent=11 // pred_check_branch
          %128 = sbr.rel (%p126) target = $region16
        $region15: #{tpu_custom_call.1} parent=11 // pred_region
          _
        $region16: #{tpu_custom_call.1} parent=11 // pred_fallthru
          _
      $region12: #{tpu_custom_call.1} parent=5 // pred_fallthru
        _
      %p129 = scmp.lt.s32.totalorder %s12, 2
      // Predicated region
      $region17: #{tpu_custom_call.1} parent=5 // pred_check
        %p130 = pneg %p129
      $region18: #{tpu_custom_call.1} parent=5 // pred_check_branch
        %132 = sbr.rel (%p130) target = $region20
      $region19: #{tpu_custom_call.1} parent=5 // pred_region
        // Predicated region
        $region21: #{tpu_custom_call.1} parent=19 // pred_check
          %p133 = pneg %p32
        $region22: #{tpu_custom_call.1} parent=19 // pred_check_branch
          %135 = sbr.rel (%p133) target = $region24
        $region23: #{tpu_custom_call.1} parent=19 // pred_region
          %s136 = smul.u32 32, %s12
          %p137 = scmp.lt.s32.totalorder %s136, 63
          %s138 = scalar_select %p137, %s136, 63
          %s139 = smul.addr %s138, 8
          %s140 = scalar_lea.vmem %s0, %s139
          %s141 = smul.u32 32, %s12
        $region24: #{tpu_custom_call.1} parent=19 // pred_fallthru
          _
        // Predicated region
        $region25: #{tpu_custom_call.1} parent=19 // pred_check
          %p142 = pneg %p58
        $region26: #{tpu_custom_call.1} parent=19 // pred_check_branch
          %144 = sbr.rel (%p142) target = $region28
        $region27: #{tpu_custom_call.1} parent=19 // pred_region
          %s145 = smul.u32 32, %s12
          %p146 = scmp.lt.s32.totalorder %s145, 63
          %s147 = scalar_select %p146, %s145, 63
          %s148 = smul.addr %s147, 8
          %s149 = scalar_lea.vmem %s1, %s148
          %s150 = smul.u32 32, %s12
        $region28: #{tpu_custom_call.1} parent=19 // pred_fallthru
          _
      $region20: #{tpu_custom_call.1} parent=5 // pred_fallthru
        _
      %p151 = scmp.le.s32.totalorder 1, %s12
      %p152 = scmp.lt.s32.totalorder %s12, 3
      %p153 = pnand %p151, %p152
      %p154 = pneg %p153
      // Predicated region
      $region29: #{tpu_custom_call.1} parent=5 // pred_check
        _
      $region30: #{tpu_custom_call.1} parent=5 // pred_check_branch
        %156 = sbr.rel (%p153) target = $region32
      $region31: #{tpu_custom_call.1} parent=5 // pred_region
        %s157 = ssub.s32 %s12, 1
        %s158 = smul.u32 32, %s17
        %p159 = scmp.lt.s32.totalorder %s158, 63
        %s160 = scalar_select %p159, %s158, 63
        %s161 = smul.addr %s160, 8
        %s162 = scalar_lea.vmem %s0, %s161
        %p163 = pneg %p38
        %p164 = pneg %p35
        %s165 = smul.u32 32, %s17
        %p166 = scmp.lt.s32.totalorder %s165, 63
        %s167 = scalar_select %p166, %s165, 63
        %s168 = smul.addr %s167, 8
        %s169 = scalar_lea.vmem %s1, %s168
        %p170 = pneg %p64
        %p171 = pneg %p61
        %p172 = pneg %p85
        %p173 = pneg %p82
        %p174 = pneg %p111
        %p175 = pneg %p108
        %s176 = sand.u32 %s98, 1
        %s177 = scalar_lea.sflag [#allocation3], %s176
        %s178 = sand.u32 %s98, 1
        %s179 = smul.addr %s178, 256
        %s180 = scalar_lea.vmem [#allocation2], %s179
        %s181 = smul.u32 32, %s17
        %p182 = scmp.lt.s32.totalorder %s181, 63
        %s183 = scalar_select %p182, %s181, 63
        %s184 = smul.addr %s183, 8
        %s185 = scalar_lea.vmem %s0, %s184
        %s186 = smul.u32 32, %s17
        %s187 = smul.u32 32, %s17
        %p188 = scmp.lt.s32.totalorder %s187, 63
        %s189 = scalar_select %p188, %s187, 63
        %s190 = smul.addr %s189, 8
        %s191 = scalar_lea.vmem %s1, %s190
        %s192 = smul.u32 32, %s17
        %s193 = smul.u32 32, %s17
        %v194 = vld [vmem:[%s191] sm:$0xff]
        %v195 = vld [vmem:[%s191 + $0x8] sm:$0xff]
        %v196 = vld [vmem:[%s191 + $0x10] sm:$0xff]
        %v197 = vld [vmem:[%s191 + $0x18] sm:$0xff]
        %v198 = vld [vmem:[%s191 + $0x20] sm:$0xff]
        %v199 = vld [vmem:[%s191 + $0x28] sm:$0xff]
        %v200 = vld [vmem:[%s191 + $0x30] sm:$0xff]
        %v201 = vld [vmem:[%s191 + $0x38] sm:$0xff]
        %v202 = vld [vmem:[%s191 + $0x40] sm:$0xff]
        %v203 = vld [vmem:[%s191 + $0x48] sm:$0xff]
        %v204 = vld [vmem:[%s191 + $0x50] sm:$0xff]
        %v205 = vld [vmem:[%s191 + $0x58] sm:$0xff]
        %v206 = vld [vmem:[%s191 + $0x60] sm:$0xff]
        %v207 = vld [vmem:[%s191 + $0x68] sm:$0xff]
        %v208 = vld [vmem:[%s191 + $0x70] sm:$0xff]
        %v209 = vld [vmem:[%s191 + $0x78] sm:$0xff]
        %v210 = vld [vmem:[%s191 + $0x80] sm:$0xff]
        %v211 = vld [vmem:[%s191 + $0x88] sm:$0xff]
        %v212 = vld [vmem:[%s191 + $0x90] sm:$0xff]
        %v213 = vld [vmem:[%s191 + $0x98] sm:$0xff]
        %v214 = vld [vmem:[%s191 + $0xa0] sm:$0xff]
        %v215 = vld [vmem:[%s191 + $0xa8] sm:$0xff]
        %v216 = vld [vmem:[%s191 + $0xb0] sm:$0xff]
        %v217 = vld [vmem:[%s191 + $0xb8] sm:$0xff]
        %v218 = vld [vmem:[%s191 + $0xc0] sm:$0xff]
        %v219 = vld [vmem:[%s191 + $0xc8] sm:$0xff]
        %v220 = vld [vmem:[%s191 + $0xd0] sm:$0xff]
        %v221 = vld [vmem:[%s191 + $0xd8] sm:$0xff]
        %v222 = vld [vmem:[%s191 + $0xe0] sm:$0xff]
        %v223 = vld [vmem:[%s191 + $0xe8] sm:$0xff]
        %v224 = vld [vmem:[%s191 + $0xf0] sm:$0xff]
        %v225 = vld [vmem:[%s191 + $0xf8] sm:$0xff]
        %v226 = vld [vmem:[%s2] sm:$0xff]
        %vm227 = vcmask 64512
        %v229 = vsel %vm227, %v194, 0
        %v232 = vsel %vm227, %v195, 0
        %v235 = vsel %vm227, %v196, 0
        %v238 = vsel %vm227, %v197, 0
        %v241 = vsel %vm227, %v198, 0
        %v244 = vsel %vm227, %v199, 0
        %v247 = vsel %vm227, %v200, 0
        %v250 = vsel %vm227, %v201, 0
        %v253 = vsel %vm227, %v202, 0
        %v256 = vsel %vm227, %v203, 0
        %v259 = vsel %vm227, %v204, 0
        %v262 = vsel %vm227, %v205, 0
        %v265 = vsel %vm227, %v206, 0
        %v268 = vsel %vm227, %v207, 0
        %v271 = vsel %vm227, %v208, 0
        %v274 = vsel %vm227, %v209, 0
        %v277 = vsel %vm227, %v210, 0
        %v280 = vsel %vm227, %v211, 0
        %v283 = vsel %vm227, %v212, 0
        %v286 = vsel %vm227, %v213, 0
        %v289 = vsel %vm227, %v214, 0
        %v292 = vsel %vm227, %v215, 0
        %v295 = vsel %vm227, %v216, 0
        %v298 = vsel %vm227, %v217, 0
        %v301 = vsel %vm227, %v218, 0
        %v304 = vsel %vm227, %v219, 0
        %v307 = vsel %vm227, %v220, 0
        %v310 = vsel %vm227, %v221, 0
        %v313 = vsel %vm227, %v222, 0
        %v316 = vsel %vm227, %v223, 0
        %v319 = vsel %vm227, %v224, 0
        %v322 = vsel %vm227, %v225, 0
        %324 = vmatprep.subr.mxu0 0.0
        %325 = vmatpush1.msra.mxu0 0.0
        %326 = vmatprep.subr.mxu0 0.0
        %327 = vmatpush1.msra.mxu0 0.0
        %328 = vmatprep.subr.mxu0 0.0
        %329 = vmatpush1.msra.mxu0 0.0
        %330 = vmatprep.subr.mxu0 0.0
        %331 = vmatpush1.msra.mxu0 0.0
        %332 = vmatprep.subr.mxu0 0.0
        %333 = vmatpush1.msra.mxu0 0.0
        %334 = vmatprep.subr.mxu0 0.0
        %335 = vmatpush1.msra.mxu0 0.0
        %336 = vmatprep.subr.mxu0 0.0
        %337 = vmatpush1.msra.mxu0 0.0
        %338 = vmatprep.subr.mxu0 0.0
        %339 = vmatpush1.msra.mxu0 0.0
        %340 = vmatprep.subr.mxu0 0.0
        %341 = vmatpush1.msra.mxu0 0.0
        %342 = vmatprep.subr.mxu0 0.0
        %343 = vmatpush1.msra.mxu0 0.0
        %344 = vmatprep.subr.mxu0 0.0
        %345 = vmatpush1.msra.mxu0 0.0
        %346 = vmatprep.subr.mxu0 0.0
        %347 = vmatpush1.msra.mxu0 0.0
        %348 = vmatprep.subr.mxu0 0.0
        %349 = vmatpush1.msra.mxu0 0.0
        %350 = vmatprep.subr.mxu0 0.0
        %351 = vmatpush1.msra.mxu0 0.0
        %352 = vmatprep.subr.mxu0 0.0
        %353 = vmatpush1.msra.mxu0 0.0
        %354 = vmatprep.subr.mxu0 0.0
        %355 = vmatpush1.msra.mxu0 %v226
        %356 = vmatprep.subr.mxu0 0.0
        %357 = vmatpush2.msra.mxu0 0.0
        %358 = vmatprep.subr.mxu0 0.0
        %359 = vmatpush2.msra.mxu0 0.0
        %360 = vmatprep.subr.mxu0 0.0
        %361 = vmatpush2.msra.mxu0 0.0
        %362 = vmatprep.subr.mxu0 0.0
        %363 = vmatpush2.msra.mxu0 0.0
        %364 = vmatprep.subr.mxu0 0.0
        %365 = vmatpush2.msra.mxu0 0.0
        %366 = vmatprep.subr.mxu0 0.0
        %367 = vmatpush2.msra.mxu0 0.0
        %368 = vmatprep.subr.mxu0 0.0
        %369 = vmatpush2.msra.mxu0 0.0
        %370 = vmatprep.subr.mxu0 0.0
        %371 = vmatpush2.msra.mxu0 0.0
        %372 = vmatprep.subr.mxu0 0.0
        %373 = vmatpush2.msra.mxu0 0.0
        %374 = vmatprep.subr.mxu0 0.0
        %375 = vmatpush2.msra.mxu0 0.0
        %376 = vmatprep.subr.mxu0 0.0
        %377 = vmatpush2.msra.mxu0 0.0
        %378 = vmatprep.subr.mxu0 0.0
        %379 = vmatpush2.msra.mxu0 0.0
        %380 = vmatprep.subr.mxu0 0.0
        %381 = vmatpush2.msra.mxu0 0.0
        %382 = vmatprep.subr.mxu0 0.0
        %383 = vmatpush2.msra.mxu0 0.0
        %384 = vmatprep.subr.mxu0 0.0
        %385 = vmatpush2.msra.mxu0 0.0
        %386 = vmatprep.subr.mxu0 0.0
        %387 = vmatpush2.msra.mxu0 0.0
        %388 = vmatprep.mubr.f32.mxu0 0.0
        %389 = vmatmul.mubr.f32.gmra.mxu0 %v229
        %v390 = vpop.f32.mrf.mxu0
        %v391 = vadd.f32 0.0, %v390
        %v392 = vpop.f32.mrf.mxu0
        %393 = vmatprep.mubr.f32.mxu0 0.0
        %394 = vmatmul.mubr.f32.gmra.mxu0 %v232
        %v395 = vpop.f32.mrf.mxu0
        %v396 = vadd.f32 0.0, %v395
        %v397 = vpop.f32.mrf.mxu0
        %398 = vmatprep.mubr.f32.mxu0 0.0
        %399 = vmatmul.mubr.f32.gmra.mxu0 %v235
        %v400 = vpop.f32.mrf.mxu0
        %v401 = vadd.f32 0.0, %v400
        %v402 = vpop.f32.mrf.mxu0
        %403 = vmatprep.mubr.f32.mxu0 0.0
        %404 = vmatmul.mubr.f32.gmra.mxu0 %v238
        %v405 = vpop.f32.mrf.mxu0
        %v406 = vadd.f32 0.0, %v405
        %v407 = vpop.f32.mrf.mxu0
        %408 = vmatprep.mubr.f32.mxu0 0.0
        %409 = vmatmul.mubr.f32.gmra.mxu0 %v241
        %v410 = vpop.f32.mrf.mxu0
        %v411 = vadd.f32 0.0, %v410
        %v412 = vpop.f32.mrf.mxu0
        %413 = vmatprep.mubr.f32.mxu0 0.0
        %414 = vmatmul.mubr.f32.gmra.mxu0 %v244
        %v415 = vpop.f32.mrf.mxu0
        %v416 = vadd.f32 0.0, %v415
        %v417 = vpop.f32.mrf.mxu0
        %418 = vmatprep.mubr.f32.mxu0 0.0
        %419 = vmatmul.mubr.f32.gmra.mxu0 %v247
        %v420 = vpop.f32.mrf.mxu0
        %v421 = vadd.f32 0.0, %v420
        %v422 = vpop.f32.mrf.mxu0
        %423 = vmatprep.mubr.f32.mxu0 0.0
        %424 = vmatmul.mubr.f32.gmra.mxu0 %v250
        %v425 = vpop.f32.mrf.mxu0
        %v426 = vadd.f32 0.0, %v425
        %v427 = vpop.f32.mrf.mxu0
        %428 = vmatprep.mubr.f32.mxu0 0.0
        %429 = vmatmul.mubr.f32.gmra.mxu0 %v253
        %v430 = vpop.f32.mrf.mxu0
        %v431 = vadd.f32 0.0, %v430
        %v432 = vpop.f32.mrf.mxu0
        %433 = vmatprep.mubr.f32.mxu0 0.0
        %434 = vmatmul.mubr.f32.gmra.mxu0 %v256
        %v435 = vpop.f32.mrf.mxu0
        %v436 = vadd.f32 0.0, %v435
        %v437 = vpop.f32.mrf.mxu0
        %438 = vmatprep.mubr.f32.mxu0 0.0
        %439 = vmatmul.mubr.f32.gmra.mxu0 %v259
        %v440 = vpop.f32.mrf.mxu0
        %v441 = vadd.f32 0.0, %v440
        %v442 = vpop.f32.mrf.mxu0
        %443 = vmatprep.mubr.f32.mxu0 0.0
        %444 = vmatmul.mubr.f32.gmra.mxu0 %v262
        %v445 = vpop.f32.mrf.mxu0
        %v446 = vadd.f32 0.0, %v445
        %v447 = vpop.f32.mrf.mxu0
        %448 = vmatprep.mubr.f32.mxu0 0.0
        %449 = vmatmul.mubr.f32.gmra.mxu0 %v265
        %v450 = vpop.f32.mrf.mxu0
        %v451 = vadd.f32 0.0, %v450
        %v452 = vpop.f32.mrf.mxu0
        %453 = vmatprep.mubr.f32.mxu0 0.0
        %454 = vmatmul.mubr.f32.gmra.mxu0 %v268
        %v455 = vpop.f32.mrf.mxu0
        %v456 = vadd.f32 0.0, %v455
        %v457 = vpop.f32.mrf.mxu0
        %458 = vmatprep.mubr.f32.mxu0 0.0
        %459 = vmatmul.mubr.f32.gmra.mxu0 %v271
        %v460 = vpop.f32.mrf.mxu0
        %v461 = vadd.f32 0.0, %v460
        %v462 = vpop.f32.mrf.mxu0
        %463 = vmatprep.mubr.f32.mxu0 0.0
        %464 = vmatmul.mubr.f32.gmra.mxu0 %v274
        %v465 = vpop.f32.mrf.mxu0
        %v466 = vadd.f32 0.0, %v465
        %v467 = vpop.f32.mrf.mxu0
        %468 = vmatprep.mubr.f32.mxu0 0.0
        %469 = vmatmul.mubr.f32.gmra.mxu0 %v277
        %v470 = vpop.f32.mrf.mxu0
        %v471 = vadd.f32 0.0, %v470
        %v472 = vpop.f32.mrf.mxu0
        %473 = vmatprep.mubr.f32.mxu0 0.0
        %474 = vmatmul.mubr.f32.gmra.mxu0 %v280
        %v475 = vpop.f32.mrf.mxu0
        %v476 = vadd.f32 0.0, %v475
        %v477 = vpop.f32.mrf.mxu0
        %478 = vmatprep.mubr.f32.mxu0 0.0
        %479 = vmatmul.mubr.f32.gmra.mxu0 %v283
        %v480 = vpop.f32.mrf.mxu0
        %v481 = vadd.f32 0.0, %v480
        %v482 = vpop.f32.mrf.mxu0
        %483 = vmatprep.mubr.f32.mxu0 0.0
        %484 = vmatmul.mubr.f32.gmra.mxu0 %v286
        %v485 = vpop.f32.mrf.mxu0
        %v486 = vadd.f32 0.0, %v485
        %v487 = vpop.f32.mrf.mxu0
        %488 = vmatprep.mubr.f32.mxu0 0.0
        %489 = vmatmul.mubr.f32.gmra.mxu0 %v289
        %v490 = vpop.f32.mrf.mxu0
        %v491 = vadd.f32 0.0, %v490
        %v492 = vpop.f32.mrf.mxu0
        %493 = vmatprep.mubr.f32.mxu0 0.0
        %494 = vmatmul.mubr.f32.gmra.mxu0 %v292
        %v495 = vpop.f32.mrf.mxu0
        %v496 = vadd.f32 0.0, %v495
        %v497 = vpop.f32.mrf.mxu0
        %498 = vmatprep.mubr.f32.mxu0 0.0
        %499 = vmatmul.mubr.f32.gmra.mxu0 %v295
        %v500 = vpop.f32.mrf.mxu0
        %v501 = vadd.f32 0.0, %v500
        %v502 = vpop.f32.mrf.mxu0
        %503 = vmatprep.mubr.f32.mxu0 0.0
        %504 = vmatmul.mubr.f32.gmra.mxu0 %v298
        %v505 = vpop.f32.mrf.mxu0
        %v506 = vadd.f32 0.0, %v505
        %v507 = vpop.f32.mrf.mxu0
        %508 = vmatprep.mubr.f32.mxu0 0.0
        %509 = vmatmul.mubr.f32.gmra.mxu0 %v301
        %v510 = vpop.f32.mrf.mxu0
        %v511 = vadd.f32 0.0, %v510
        %v512 = vpop.f32.mrf.mxu0
        %513 = vmatprep.mubr.f32.mxu0 0.0
        %514 = vmatmul.mubr.f32.gmra.mxu0 %v304
        %v515 = vpop.f32.mrf.mxu0
        %v516 = vadd.f32 0.0, %v515
        %v517 = vpop.f32.mrf.mxu0
        %518 = vmatprep.mubr.f32.mxu0 0.0
        %519 = vmatmul.mubr.f32.gmra.mxu0 %v307
        %v520 = vpop.f32.mrf.mxu0
        %v521 = vadd.f32 0.0, %v520
        %v522 = vpop.f32.mrf.mxu0
        %523 = vmatprep.mubr.f32.mxu0 0.0
        %524 = vmatmul.mubr.f32.gmra.mxu0 %v310
        %v525 = vpop.f32.mrf.mxu0
        %v526 = vadd.f32 0.0, %v525
        %v527 = vpop.f32.mrf.mxu0
        %528 = vmatprep.mubr.f32.mxu0 0.0
        %529 = vmatmul.mubr.f32.gmra.mxu0 %v313
        %v530 = vpop.f32.mrf.mxu0
        %v531 = vadd.f32 0.0, %v530
        %v532 = vpop.f32.mrf.mxu0
        %533 = vmatprep.mubr.f32.mxu0 0.0
        %534 = vmatmul.mubr.f32.gmra.mxu0 %v316
        %v535 = vpop.f32.mrf.mxu0
        %v536 = vadd.f32 0.0, %v535
        %v537 = vpop.f32.mrf.mxu0
        %538 = vmatprep.mubr.f32.mxu0 0.0
        %539 = vmatmul.mubr.f32.gmra.mxu0 %v319
        %v540 = vpop.f32.mrf.mxu0
        %v541 = vadd.f32 0.0, %v540
        %v542 = vpop.f32.mrf.mxu0
        %543 = vmatprep.mubr.f32.mxu0 0.0
        %544 = vmatmul.mubr.f32.gmra.mxu0 %v322
        %v545 = vpop.f32.mrf.mxu0
        %v546 = vadd.f32 0.0, %v545
        %v547 = vpop.f32.mrf.mxu0
        %548 = vdwg.mxu0
        %v549 = vld [vmem:[%s185] sm:$0xff]
        %v550 = vld [vmem:[%s185 + $0x8] sm:$0xff]
        %v551 = vld [vmem:[%s185 + $0x10] sm:$0xff]
        %v552 = vld [vmem:[%s185 + $0x18] sm:$0xff]
        %v553 = vld [vmem:[%s185 + $0x20] sm:$0xff]
        %v554 = vld [vmem:[%s185 + $0x28] sm:$0xff]
        %v555 = vld [vmem:[%s185 + $0x30] sm:$0xff]
        %v556 = vld [vmem:[%s185 + $0x38] sm:$0xff]
        %v557 = vld [vmem:[%s185 + $0x40] sm:$0xff]
        %v558 = vld [vmem:[%s185 + $0x48] sm:$0xff]
        %v559 = vld [vmem:[%s185 + $0x50] sm:$0xff]
        %v560 = vld [vmem:[%s185 + $0x58] sm:$0xff]
        %v561 = vld [vmem:[%s185 + $0x60] sm:$0xff]
        %v562 = vld [vmem:[%s185 + $0x68] sm:$0xff]
        %v563 = vld [vmem:[%s185 + $0x70] sm:$0xff]
        %v564 = vld [vmem:[%s185 + $0x78] sm:$0xff]
        %v565 = vld [vmem:[%s185 + $0x80] sm:$0xff]
        %v566 = vld [vmem:[%s185 + $0x88] sm:$0xff]
        %v567 = vld [vmem:[%s185 + $0x90] sm:$0xff]
        %v568 = vld [vmem:[%s185 + $0x98] sm:$0xff]
        %v569 = vld [vmem:[%s185 + $0xa0] sm:$0xff]
        %v570 = vld [vmem:[%s185 + $0xa8] sm:$0xff]
        %v571 = vld [vmem:[%s185 + $0xb0] sm:$0xff]
        %v572 = vld [vmem:[%s185 + $0xb8] sm:$0xff]
        %v573 = vld [vmem:[%s185 + $0xc0] sm:$0xff]
        %v574 = vld [vmem:[%s185 + $0xc8] sm:$0xff]
        %v575 = vld [vmem:[%s185 + $0xd0] sm:$0xff]
        %v576 = vld [vmem:[%s185 + $0xd8] sm:$0xff]
        %v577 = vld [vmem:[%s185 + $0xe0] sm:$0xff]
        %v578 = vld [vmem:[%s185 + $0xe8] sm:$0xff]
        %v579 = vld [vmem:[%s185 + $0xf0] sm:$0xff]
        %v580 = vld [vmem:[%s185 + $0xf8] sm:$0xff]
        %v581 = vadd.f32 %v549, %v391
        %v582 = vadd.f32 %v550, %v396
        %v583 = vadd.f32 %v551, %v401
        %v584 = vadd.f32 %v552, %v406
        %v585 = vadd.f32 %v553, %v411
        %v586 = vadd.f32 %v554, %v416
        %v587 = vadd.f32 %v555, %v421
        %v588 = vadd.f32 %v556, %v426
        %v589 = vadd.f32 %v557, %v431
        %v590 = vadd.f32 %v558, %v436
        %v591 = vadd.f32 %v559, %v441
        %v592 = vadd.f32 %v560, %v446
        %v593 = vadd.f32 %v561, %v451
        %v594 = vadd.f32 %v562, %v456
        %v595 = vadd.f32 %v563, %v461
        %v596 = vadd.f32 %v564, %v466
        %v597 = vadd.f32 %v565, %v471
        %v598 = vadd.f32 %v566, %v476
        %v599 = vadd.f32 %v567, %v481
        %v600 = vadd.f32 %v568, %v486
        %v601 = vadd.f32 %v569, %v491
        %v602 = vadd.f32 %v570, %v496
        %v603 = vadd.f32 %v571, %v501
        %v604 = vadd.f32 %v572, %v506
        %v605 = vadd.f32 %v573, %v511
        %v606 = vadd.f32 %v574, %v516
        %v607 = vadd.f32 %v575, %v521
        %v608 = vadd.f32 %v576, %v526
        %v609 = vadd.f32 %v577, %v531
        %v610 = vadd.f32 %v578, %v536
        %v611 = vadd.f32 %v579, %v541
        %v612 = vadd.f32 %v580, %v546
        %613 = vst [vmem:[%s180] sm:$0xff] %v581
        %614 = vst [vmem:[%s180 + $0x8] sm:$0xff] %v582
        %615 = vst [vmem:[%s180 + $0x10] sm:$0xff] %v583
        %616 = vst [vmem:[%s180 + $0x18] sm:$0xff] %v584
        %617 = vst [vmem:[%s180 + $0x20] sm:$0xff] %v585
        %618 = vst [vmem:[%s180 + $0x28] sm:$0xff] %v586
        %619 = vst [vmem:[%s180 + $0x30] sm:$0xff] %v587
        %620 = vst [vmem:[%s180 + $0x38] sm:$0xff] %v588
        %621 = vst [vmem:[%s180 + $0x40] sm:$0xff] %v589
        %622 = vst [vmem:[%s180 + $0x48] sm:$0xff] %v590
        %623 = vst [vmem:[%s180 + $0x50] sm:$0xff] %v591
        %624 = vst [vmem:[%s180 + $0x58] sm:$0xff] %v592
        %625 = vst [vmem:[%s180 + $0x60] sm:$0xff] %v593
        %626 = vst [vmem:[%s180 + $0x68] sm:$0xff] %v594
        %627 = vst [vmem:[%s180 + $0x70] sm:$0xff] %v595
        %628 = vst [vmem:[%s180 + $0x78] sm:$0xff] %v596
        %629 = vst [vmem:[%s180 + $0x80] sm:$0xff] %v597
        %630 = vst [vmem:[%s180 + $0x88] sm:$0xff] %v598
        %631 = vst [vmem:[%s180 + $0x90] sm:$0xff] %v599
        %632 = vst [vmem:[%s180 + $0x98] sm:$0xff] %v600
        %633 = vst [vmem:[%s180 + $0xa0] sm:$0xff] %v601
        %634 = vst [vmem:[%s180 + $0xa8] sm:$0xff] %v602
        %635 = vst [vmem:[%s180 + $0xb0] sm:$0xff] %v603
        %636 = vst [vmem:[%s180 + $0xb8] sm:$0xff] %v604
        %637 = vst [vmem:[%s180 + $0xc0] sm:$0xff] %v605
        %638 = vst [vmem:[%s180 + $0xc8] sm:$0xff] %v606
        %639 = vst [vmem:[%s180 + $0xd0] sm:$0xff] %v607
        %640 = vst [vmem:[%s180 + $0xd8] sm:$0xff] %v608
        %641 = vst [vmem:[%s180 + $0xe0] sm:$0xff] %v609
        %642 = vst [vmem:[%s180 + $0xe8] sm:$0xff] %v610
        %643 = vst [vmem:[%s180 + $0xf0] sm:$0xff] %v611
        %644 = vst [vmem:[%s180 + $0xf8] sm:$0xff] %v612
        %s645 = sand.u32 %s98, 1
        %s646 = scalar_lea.sflag [#allocation3], %s645
        %s647 = sand.u32 %s98, 1
        %s648 = smul.addr %s647, 256
        %s649 = scalar_lea.vmem [#allocation2], %s648
        // Predicated region
        $region33: #{tpu_custom_call.1} parent=31 // pred_check
          %p650 = pneg %p108
        $region34: #{tpu_custom_call.1} parent=31 // pred_check_branch
          %652 = sbr.rel (%p650) target = $region36
        $region35: #{tpu_custom_call.1} parent=31 // pred_region
          %s653 = smul.u32 32, %s17
          %s655 = ssub.s32 4096, 4096
          %656 = vsyncadd %s646, %s655
          %s657 = smul.addr %s653, 128
          %s658 = scalar_lea.hbm %s3, %s657
          %s659 = sshll.u32 %s649, 4
          %s660 = int_to_ptr.vmem [resolvable:$true] %s659
          %665 = dma.vmem_to_hbm [thread:$0]  %s660, 4096, %s658, %s646, 128, 128, 8
        $region36: #{tpu_custom_call.1} parent=31 // pred_fallthru
          _
      $region32: #{tpu_custom_call.1} parent=5 // pred_fallthru
        _
      %p666 = scmp.le.s32.totalorder 2, %s12
      // Predicated region
      $region37: #{tpu_custom_call.1} parent=5 // pred_check
        %p667 = pneg %p666
      $region38: #{tpu_custom_call.1} parent=5 // pred_check_branch
        %669 = sbr.rel (%p667) target = $region40
      $region39: #{tpu_custom_call.1} parent=5 // pred_region
        %s670 = ssub.s32 %s12, 2
        // Predicated region
        $region41: #{tpu_custom_call.1} parent=39 // pred_check
          %p671 = pneg %p114
        $region42: #{tpu_custom_call.1} parent=39 // pred_check_branch
          %673 = sbr.rel (%p671) target = $region44
        $region43: #{tpu_custom_call.1} parent=39 // pred_region
          %s674 = sand.u32 %s99, 1
          %s675 = scalar_lea.sflag [#allocation3], %s674
          %s676 = sand.u32 %s99, 1
          %s677 = smul.addr %s676, 256
          %s678 = scalar_lea.vmem [#allocation2], %s677
          %679 = dma.done %s675, 4096
        $region44: #{tpu_custom_call.1} parent=39 // pred_fallthru
          _
      $region40: #{tpu_custom_call.1} parent=5 // pred_fallthru
        _
    $region6: #{tpu_custom_call.1} parent=1 // loop_footer
      %s16 = sadd.s32 1, %s12
    $region7: #{tpu_custom_call.1} parent=1 // loop_footer_branch
      %11 = sbr.rel target = $region3
    $region8: #{tpu_custom_call.1} parent=1 // loop_exit
      _
    %680 = vsyncpa [#allocation3], 1
    %s681 = scalar_lea.sflag [#allocation3], 1
    %682 = vsyncpa %s681, 1

</llo_original>
